<compile_context>
chip_gen: v7x
topology: tpu7x:2x2x1
jax: 0.10.0
libtpu: 0.0.40
codegen_flags: <defaults>
</compile_context>

<pallas_src>
import functools

import jax
import jax.numpy as jnp
import numpy as np
from jax import lax
from jax.experimental import pallas as pl
from jax.experimental.pallas import tpu as pltpu

EPS = 1e-12


# ------------------------------------------------------------------
# Kernel 1: power iteration -> inv_sigma (1,1), u_new, v_new.
# Tiny / latency-bound; only scalars + the u/v state leave the kernel.
# ------------------------------------------------------------------
def _sn_kernel(w_ref, u_ref, v_ref, isig_ref, u_out_ref, v_out_ref, *,
               power_iterations):
    w = w_ref[...]                      # (out_c, K)  f32, OIHW flatten order
    u = u_ref[...]                      # (1, out_c)
    v = v_ref[...]                      # (1, K)

    for _ in range(power_iterations):
        # v = l2normalize(W^T u)  -> row vector (1, K)
        v = lax.dot_general(u, w, (((1,), (0,)), ((), ())),
                            preferred_element_type=jnp.float32)
        v = v / (jnp.sqrt(jnp.sum(v * v)) + EPS)
        # u = l2normalize(W v)    -> row vector (1, out_c)
        u = lax.dot_general(v, w, (((1,), (1,)), ((), ())),
                            preferred_element_type=jnp.float32)
        u = u / (jnp.sqrt(jnp.sum(u * u)) + EPS)

    # sigma = u . (W v) ; emit 1/sigma so the conv kernel only multiplies.
    uw = lax.dot_general(u, w, (((1,), (0,)), ((), ())),
                         preferred_element_type=jnp.float32)      # (1, K)
    sigma = jnp.sum(uw * v, keepdims=True)                        # (1, 1)
    isig_ref[...] = 1.0 / sigma
    u_out_ref[...] = u
    v_out_ref[...] = v


# ------------------------------------------------------------------
# Kernel 2: fused im2col conv.
#   x_ref : (1, C, (Hp+1)*Wp)  zero-padded, spatially-flattened image (f32)
#   w_ref : (out_c, kh*kw*C)   tap-major / channel-minor weight (resident)
#   b_ref : (out_c, 1)
#   isig  : (1, 1) scalar in SMEM
#   o_ref : (1, out_c, H_out*W_out)  -> reshapes to NCHW for free
# For tap (di, dj) the contribution is w_tap (out_c, C) @ x[:, off : off+M']
# where off = di*Wp + dj and M' = H_out*Wp (Wp-strided rows; the Wp-W_out
# "garbage" columns are computed but never stored).
# ------------------------------------------------------------------
def _conv_fused_kernel(w_ref, b_ref, isig_ref, x_ref, o_ref, *,
                       C, Wp, H_out, W_out, kh, kw):
    out_c = w_ref.shape[0]
    Mw = H_out * Wp

    acc = jnp.zeros((out_c, Mw), jnp.float32)
    for di in range(kh):
        for dj in range(kw):
            t = di * kw + dj
            w_tap = w_ref[:, t * C:(t + 1) * C]                  # (out_c, C)
            off = di * Wp + dj
            x_win = x_ref[0, :, off:off + Mw]                    # (C, Mw)
            acc = acc + lax.dot_general(
                w_tap, x_win, (((1,), (0,)), ((), ())),
                preferred_element_type=jnp.float32)

    res = acc * isig_ref[0, 0] + b_ref[...]                      # (out_c, Mw)

    # compact the Wp-strided rows into contiguous (H_out*W_out) lanes
    for h in range(H_out):
        o_ref[0, :, h * W_out:(h + 1) * W_out] = res[:, h * Wp:h * Wp + W_out]


# ------------------------------------------------------------------
# Helpers
# ------------------------------------------------------------------
def _vmem_limit_bytes():
    # generation-aware scoped-VMEM limit (v5e/v6e: 128 MiB, v7x: 64 MiB/TC)
    try:
        cap = pltpu.get_tpu_info().vmem_capacity_bytes
    except Exception:
        cap = 128 * 1024 * 1024
    return int(min(cap // 2, 64 * 1024 * 1024))


# ------------------------------------------------------------------
# Wrapper = SpectralNorm(Conv2d(in_c, out_c, k, stride=1, pad=1)).forward
# ------------------------------------------------------------------
def spectral_norm_conv2d(x, w_bar, bias, u, v, *, power_iterations=1,
                         padding=1):
    N, C, H, W = x.shape
    out_c, in_c, kh, kw = w_bar.shape
    assert C == in_c
    K = in_c * kh * kw
    Hp, Wp = H + 2 * padding, W + 2 * padding
    H_out, W_out = Hp - kh + 1, Wp - kw + 1

    vmem = pl.BlockSpec(memory_space=pltpu.MemorySpace.VMEM)
    smem = pl.BlockSpec(memory_space=pltpu.MemorySpace.SMEM)

    # ---- spectral norm: power iteration + 1/sigma (single tiny launch) ----
    # w_bar is consumed in its native OIHW flatten order (free reshape).
    w_sn = w_bar.reshape(out_c, K).astype(jnp.float32)
    inv_sigma, u_new, v_new = pl.pallas_call(
        functools.partial(_sn_kernel, power_iterations=power_iterations),
        out_shape=(
            jax.ShapeDtypeStruct((1, 1), jnp.float32),
            jax.ShapeDtypeStruct((1, out_c), jnp.float32),
            jax.ShapeDtypeStruct((1, K), jnp.float32),
        ),
        in_specs=[vmem, vmem, vmem],
        out_specs=(vmem, vmem, vmem),
    )(w_sn,
      u.reshape(1, out_c).astype(jnp.float32),
      v.reshape(1, K).astype(jnp.float32))

    # ---- fused im2col conv ----
    # Zero-pad NCHW once (plus one extra bottom row so the last tap's shifted
    # window stays in-bounds) and flatten the spatial dims; no transpose, no
    # 9x patch materialization, no cast pass.
    xp = jnp.pad(x.astype(jnp.float32),
                 ((0, 0), (0, 0), (padding, padding + 1), (padding, padding)))
    flat_len = (Hp + 1) * Wp
    xf = xp.reshape(N, C, flat_len)
    # capacity check: last tap window must stay inside the flattened row
    assert (kh - 1) * Wp + (kw - 1) + H_out * Wp <= flat_len

    # conv weight reordered tap-major / channel-minor (tiny weight-sized copy)
    w_conv = jnp.transpose(w_bar, (0, 2, 3, 1)).reshape(out_c, kh * kw * C)
    w_conv = w_conv.astype(jnp.float32)

    kernel = functools.partial(_conv_fused_kernel, C=C, Wp=Wp, H_out=H_out,
                               W_out=W_out, kh=kh, kw=kw)
    out = pl.pallas_call(
        kernel,
        out_shape=jax.ShapeDtypeStruct((N, out_c, H_out * W_out), jnp.float32),
        grid=(N,),
        in_specs=[
            vmem,                                              # weight (resident, single copy)
            vmem,                                              # bias   (resident)
            smem,                                              # inv_sigma scalar
            pl.BlockSpec((1, C, flat_len), lambda n: (n, 0, 0)),  # padded image
        ],
        out_specs=pl.BlockSpec((1, out_c, H_out * W_out),
                               lambda n: (n, 0, 0)),
        compiler_params=pltpu.CompilerParams(
            dimension_semantics=("parallel",),
            vmem_limit_bytes=_vmem_limit_bytes()),
    )(w_conv, bias.reshape(out_c, 1).astype(jnp.float32), inv_sigma, xf)

    y = out.reshape(N, out_c, H_out, W_out)       # free reshape -> NCHW
    return y, u_new.reshape(out_c), v_new.reshape(K)


# ------------------------------------------------------------------
# Pure-JAX reference (mirrors the PyTorch forward) for verification
# ------------------------------------------------------------------
def _reference(x, w_bar, bias, u, v, power_iterations=1):
    h = w_bar.shape[0]
    wm = w_bar.reshape(h, -1)
    for _ in range(power_iterations):
        v = wm.T @ u
        v = v / (jnp.linalg.norm(v) + EPS)
        u = wm @ v
        u = u / (jnp.linalg.norm(u) + EPS)
    sigma = u @ (wm @ v)
    w_sn = w_bar / sigma
    y = lax.conv_general_dilated(
        x, w_sn, (1, 1), [(1, 1), (1, 1)],
        dimension_numbers=('NCHW', 'OIHW', 'NCHW'))
    return y + bias.reshape(1, -1, 1, 1), u, v


if __name__ == "__main__":
    key = jax.random.PRNGKey(0)
    k_x, k_w, k_b, k_u, k_v = jax.random.split(key, 5)

    N, in_c, Hs, Ws = 2, 4, 16, 16
    out_c, kh, kw = 8, 3, 3

    x = jax.random.normal(k_x, (N, in_c, Hs, Ws), jnp.float32)
    w_bar = 0.1 * jax.random.normal(k_w, (out_c, in_c, kh, kw), jnp.float32)
    bias = 0.05 * jax.random.normal(k_b, (out_c,), jnp.float32)

    # u, v initialized as l2normalize(N(0,1)) -- matches _make_params
    u0 = jax.random.normal(k_u, (out_c,), jnp.float32)
    v0 = jax.random.normal(k_v, (in_c * kh * kw,), jnp.float32)
    u0 = u0 / (jnp.linalg.norm(u0) + EPS)
    v0 = v0 / (jnp.linalg.norm(v0) + EPS)

    y, u_new, v_new = spectral_norm_conv2d(x, w_bar, bias, u0, v0,
                                           power_iterations=1, padding=1)
    jax.block_until_ready((y, u_new, v_new))

    y_ref, u_ref, v_ref = _reference(x, w_bar, bias, u0, v0,
                                     power_iterations=1)
    jax.block_until_ready((y_ref, u_ref, v_ref))

    assert y.shape == y_ref.shape
    assert np.max(np.abs(np.asarray(y) - np.asarray(y_ref))) < 2e-2
    assert np.max(np.abs(np.asarray(u_new) - np.asarray(u_ref))) < 1e-3
    assert np.max(np.abs(np.asarray(v_new) - np.asarray(v_ref))) < 1e-3

    print("KERNEL_OK")
</pallas_src>

<mosaic_0001>
module attributes {stable_mosaic.version = 11 : i64} {
  func.func @_sn_kernel(%arg0: memref<8x36xf32, #tpu.memory_space<vmem>>, %arg1: memref<1x8xf32, #tpu.memory_space<vmem>>, %arg2: memref<1x36xf32, #tpu.memory_space<vmem>>, %arg3: memref<1x1xf32, #tpu.memory_space<vmem>>, %arg4: memref<1x8xf32, #tpu.memory_space<vmem>>, %arg5: memref<1x36xf32, #tpu.memory_space<vmem>>) attributes {dimension_semantics = [], scalar_prefetch = 0 : i64, scratch_operands = 0 : i64, tpu.core_type = #tpu.core_type<tc>} {
    %c0 = arith.constant 0 : index
    %c0_0 = arith.constant 0 : index
    %0 = vector.load %arg0[%c0, %c0_0] : memref<8x36xf32, #tpu.memory_space<vmem>>, vector<8x36xf32>
    %c0_1 = arith.constant 0 : index
    %c0_2 = arith.constant 0 : index
    %1 = vector.load %arg1[%c0_1, %c0_2] : memref<1x8xf32, #tpu.memory_space<vmem>>, vector<1x8xf32>
    %cst = arith.constant dense<0.000000e+00> : vector<1x36xf32>
    %2 = tpu.matmul %1, %0, %cst {dimension_numbers = #tpu.dot_dimension_numbers<[1], [0], [0], [1], [0, 0, 1, 1], [], []>} : vector<1x8xf32>, vector<8x36xf32>, vector<1x36xf32> -> vector<1x36xf32>
    %3 = arith.mulf %2, %2 : vector<1x36xf32>
    %4 = vector.shape_cast %3 : vector<1x36xf32> to vector<1x1x36xf32>
    %cst_3 = arith.constant dense<0.000000e+00> : vector<1xf32>
    %5 = vector.multi_reduction <add>, %4, %cst_3 [1, 2] : vector<1x1x36xf32> to vector<1xf32>
    %6 = vector.shape_cast %5 : vector<1xf32> to vector<1x1x1xf32>
    %7 = vector.extract %6[0, 0, 0] : f32 from vector<1x1x1xf32>
    %8 = math.sqrt %7 : f32
    %cst_4 = arith.constant 9.99999996E-13 : f32
    %9 = arith.addf %8, %cst_4 : f32
    %10 = vector.broadcast %9 : f32 to vector<1x36xf32>
    %11 = arith.divf %2, %10 : vector<1x36xf32>
    %cst_5 = arith.constant dense<0.000000e+00> : vector<1x8xf32>
    %12 = tpu.matmul %11, %0, %cst_5 {dimension_numbers = #tpu.dot_dimension_numbers<[1], [1], [0], [0], [0, 0, 1, 0], [], []>} : vector<1x36xf32>, vector<8x36xf32>, vector<1x8xf32> -> vector<1x8xf32>
    %13 = arith.mulf %12, %12 : vector<1x8xf32>
    %14 = vector.shape_cast %13 : vector<1x8xf32> to vector<1x1x8xf32>
    %cst_6 = arith.constant dense<0.000000e+00> : vector<1xf32>
    %15 = vector.multi_reduction <add>, %14, %cst_6 [1, 2] : vector<1x1x8xf32> to vector<1xf32>
    %16 = vector.shape_cast %15 : vector<1xf32> to vector<1x1x1xf32>
    %17 = vector.extract %16[0, 0, 0] : f32 from vector<1x1x1xf32>
    %18 = math.sqrt %17 : f32
    %cst_7 = arith.constant 9.99999996E-13 : f32
    %19 = arith.addf %18, %cst_7 : f32
    %20 = vector.broadcast %19 : f32 to vector<1x8xf32>
    %21 = arith.divf %12, %20 : vector<1x8xf32>
    %cst_8 = arith.constant dense<0.000000e+00> : vector<1x36xf32>
    %22 = tpu.matmul %21, %0, %cst_8 {dimension_numbers = #tpu.dot_dimension_numbers<[1], [0], [0], [1], [0, 0, 1, 1], [], []>} : vector<1x8xf32>, vector<8x36xf32>, vector<1x36xf32> -> vector<1x36xf32>
    %23 = arith.mulf %22, %11 : vector<1x36xf32>
    %24 = vector.shape_cast %23 : vector<1x36xf32> to vector<1x1x36xf32>
    %cst_9 = arith.constant dense<0.000000e+00> : vector<1xf32>
    %25 = vector.multi_reduction <add>, %24, %cst_9 [1, 2] : vector<1x1x36xf32> to vector<1xf32>
    %26 = vector.shape_cast %25 : vector<1xf32> to vector<1x1x1xf32>
    %27 = vector.extract %26[0, 0, 0] : f32 from vector<1x1x1xf32>
    %28 = vector.broadcast %27 : f32 to vector<1x1xf32>
    %cst_10 = arith.constant 1.000000e+00 : f32
    %29 = vector.broadcast %cst_10 : f32 to vector<1x1xf32>
    %30 = arith.divf %29, %28 : vector<1x1xf32>
    %c0_11 = arith.constant 0 : index
    %c0_12 = arith.constant 0 : index
    %31 = vector.load %arg3[%c0_11, %c0_12] : memref<1x1xf32, #tpu.memory_space<vmem>>, vector<1x1xf32>
    tpu.vector_store %arg3[%c0_11, %c0_12], %30 {strides = array<i32>} : memref<1x1xf32, #tpu.memory_space<vmem>>, vector<1x1xf32>,
    %c0_13 = arith.constant 0 : index
    %c0_14 = arith.constant 0 : index
    %32 = vector.load %arg4[%c0_13, %c0_14] : memref<1x8xf32, #tpu.memory_space<vmem>>, vector<1x8xf32>
    tpu.vector_store %arg4[%c0_13, %c0_14], %21 {strides = array<i32>} : memref<1x8xf32, #tpu.memory_space<vmem>>, vector<1x8xf32>,
    %c0_15 = arith.constant 0 : index
    %c0_16 = arith.constant 0 : index
    %33 = vector.load %arg5[%c0_15, %c0_16] : memref<1x36xf32, #tpu.memory_space<vmem>>, vector<1x36xf32>
    tpu.vector_store %arg5[%c0_15, %c0_16], %11 {strides = array<i32>} : memref<1x36xf32, #tpu.memory_space<vmem>>, vector<1x36xf32>,
    return
  }
}

</mosaic_0001>

<llo_original>
// kernel: tpu_custom_call.1
$region0: #{tpu_custom_call.1}
  #allocation0 [shape = 'u32[]', space=smem, size = 0x4, offset = 0x4, fixed_abs, tag = 'smem constant byte address 0x4 - core index']
  #allocation1 [shape = 'u32[144,128]{1,0:T(1,128)}', space=vmem, size = 0x12000, scoped, tag = 'internal scratch']
  %s0 = inlined_call_operand.hbm [shape: f32[8,36], index: 0, kind: input, shape index: {}]
  %s1 = inlined_call_operand.vmem [shape: f32[1,8], index: 1, kind: input, shape index: {}]
  %s2 = inlined_call_operand.vmem [shape: f32[1,36], index: 2, kind: input, shape index: {}]
  %s3 = inlined_call_operand.hbm [shape: f32[1,1], index: 3, kind: output, shape index: {0}]
  %s4 = inlined_call_operand.hbm [shape: f32[1,8], index: 4, kind: output, shape index: {1}]
  %s5 = inlined_call_operand.hbm [shape: f32[1,36], index: 5, kind: output, shape index: {2}]
  %6 = xla_tuple %s3, %s4, %s5
  %s7 = sld [smem:[#allocation0]]
  $region42: #{tpu_custom_call.1} parent=0
    _
  %s9 = ssub.s32 1, %s7
  %s10 = scalar_select 0, %s9, %s7
  $region1: #{tpu_custom_call.1} parent=0
    #allocation2 [shape = 'u8[4096]{0}', space=vmem, size = 0x1000, scoped, tag = 'input window, operand 0, single buffered']
    #allocation3 [shape = 's32[1]{0}', space=sflag, size = 0x4, scoped, tag = 'scoped memory for tpu_custom_call.1']
    #allocation4 [shape = 's32[1]{0}', space=sflag, size = 0x4, scoped, tag = 'scoped memory for tpu_custom_call.1']
    #allocation5 [shape = 'u8[512]{0}', space=vmem, size = 0x400, scoped, tag = 'output window, operand 0, single buffered']
    #allocation6 [shape = 'u8[512]{0}', space=vmem, size = 0x400, scoped, tag = 'output window, operand 1, single buffered']
    #allocation7 [shape = 's32[1]{0}', space=sflag, size = 0x4, scoped, tag = 'scoped memory for tpu_custom_call.1']
    #allocation8 [shape = 'u8[512]{0}', space=vmem, size = 0x400, scoped, tag = 'output window, operand 2, single buffered']
    %11 = vsyncpa [#allocation3], 0
    %12 = vsyncpa [#allocation4], 0
    %13 = vsyncpa [#allocation7], 0
    // Predicated region
    $region2: #{tpu_custom_call.1} parent=1 // pred_check
      _
    $region3: #{tpu_custom_call.1} parent=1 // pred_check_branch
      %15 = sbr.rel (0) target = $region5
    $region4: #{tpu_custom_call.1} parent=1 // pred_region
      %s17 = ssub.s32 128, 128
      %18 = vsyncadd [#allocation3], %s17
      %s20 = sshll.u32 [#allocation2], 4
      %s21 = int_to_ptr.vmem [resolvable:$true] %s20
      %23 = dma.hbm_to_vmem [thread:$0]  %s0, 128, %s21, [#allocation3]
    $region5: #{tpu_custom_call.1} parent=1 // pred_fallthru
      _
    // Predicated region
    $region6: #{tpu_custom_call.1} parent=1 // pred_check
      _
    $region7: #{tpu_custom_call.1} parent=1 // pred_check_branch
      %25 = sbr.rel (0) target = $region9
    $region8: #{tpu_custom_call.1} parent=1 // pred_region
      _
    $region9: #{tpu_custom_call.1} parent=1 // pred_fallthru
      _
    // Predicated region
    $region10: #{tpu_custom_call.1} parent=1 // pred_check
      _
    $region11: #{tpu_custom_call.1} parent=1 // pred_check_branch
      %27 = sbr.rel (0) target = $region13
    $region12: #{tpu_custom_call.1} parent=1 // pred_region
      _
    $region13: #{tpu_custom_call.1} parent=1 // pred_fallthru
      _
    // Predicated region
    $region14: #{tpu_custom_call.1} parent=1 // pred_check
      _
    $region15: #{tpu_custom_call.1} parent=1 // pred_check_branch
      %29 = sbr.rel (0) target = $region17
    $region16: #{tpu_custom_call.1} parent=1 // pred_region
      %30 = dma.done [#allocation3], 128
    $region17: #{tpu_custom_call.1} parent=1 // pred_fallthru
      _
    %v31 = vld [vmem:[#allocation2] sm:$0xff]
    %v32 = vld [vmem:[%s1] sm:$0x1]
    %vm33 = vcmask 64512
    %v35 = vsel %vm33, %v32, 0
    %37 = vmatprep.subr.mxu0 0.0
    %38 = vmatpush1.msra.mxu0 %v31
    %39 = vmatprep.subr.mxu0 0.0
    %40 = vmatpush1.msra.mxu0 0.0
    %41 = vmatprep.subr.mxu0 0.0
    %42 = vmatpush1.msra.mxu0 0.0
    %43 = vmatprep.subr.mxu0 0.0
    %44 = vmatpush1.msra.mxu0 0.0
    %45 = vmatprep.subr.mxu0 0.0
    %46 = vmatpush1.msra.mxu0 0.0
    %47 = vmatprep.subr.mxu0 0.0
    %48 = vmatpush1.msra.mxu0 0.0
    %49 = vmatprep.subr.mxu0 0.0
    %50 = vmatpush1.msra.mxu0 0.0
    %51 = vmatprep.subr.mxu0 0.0
    %52 = vmatpush1.msra.mxu0 0.0
    %53 = vmatprep.subr.mxu0 0.0
    %54 = vmatpush1.msra.mxu0 0.0
    %55 = vmatprep.subr.mxu0 0.0
    %56 = vmatpush1.msra.mxu0 0.0
    %57 = vmatprep.subr.mxu0 0.0
    %58 = vmatpush1.msra.mxu0 0.0
    %59 = vmatprep.subr.mxu0 0.0
    %60 = vmatpush1.msra.mxu0 0.0
    %61 = vmatprep.subr.mxu0 0.0
    %62 = vmatpush1.msra.mxu0 0.0
    %63 = vmatprep.subr.mxu0 0.0
    %64 = vmatpush1.msra.mxu0 0.0
    %65 = vmatprep.subr.mxu0 0.0
    %66 = vmatpush1.msra.mxu0 0.0
    %67 = vmatprep.subr.mxu0 0.0
    %68 = vmatpush1.msra.mxu0 0.0
    %69 = vmatprep.subr.mxu0 0.0
    %70 = vmatpush1.msra.mxu0 0.0
    %71 = vmatprep.subr.mxu0 0.0
    %72 = vmatpush1.msra.mxu0 0.0
    %73 = vmatprep.subr.mxu0 0.0
    %74 = vmatpush1.msra.mxu0 0.0
    %75 = vmatprep.subr.mxu0 0.0
    %76 = vmatpush1.msra.mxu0 0.0
    %77 = vmatprep.subr.mxu0 0.0
    %78 = vmatpush1.msra.mxu0 0.0
    %79 = vmatprep.subr.mxu0 0.0
    %80 = vmatpush1.msra.mxu0 0.0
    %81 = vmatprep.subr.mxu0 0.0
    %82 = vmatpush1.msra.mxu0 0.0
    %83 = vmatprep.subr.mxu0 0.0
    %84 = vmatpush1.msra.mxu0 0.0
    %85 = vmatprep.subr.mxu0 0.0
    %86 = vmatpush1.msra.mxu0 0.0
    %87 = vmatprep.subr.mxu0 0.0
    %88 = vmatpush1.msra.mxu0 0.0
    %89 = vmatprep.subr.mxu0 0.0
    %90 = vmatpush1.msra.mxu0 0.0
    %91 = vmatprep.subr.mxu0 0.0
    %92 = vmatpush1.msra.mxu0 0.0
    %93 = vmatprep.subr.mxu0 0.0
    %94 = vmatpush1.msra.mxu0 0.0
    %95 = vmatprep.subr.mxu0 0.0
    %96 = vmatpush1.msra.mxu0 0.0
    %97 = vmatprep.subr.mxu0 0.0
    %98 = vmatpush1.msra.mxu0 0.0
    %99 = vmatprep.subr.mxu0 0.0
    %100 = vmatpush1.msra.mxu0 0.0
    %101 = vmatprep.mubr.f32.mxu0 0.0
    %102 = vmatmul.mubr.f32.gmra.mrb[0].mxu0 %v35
    %v103 = vpop.f32.mrb[0].mxu0
    %v104 = vadd.f32 0.0, %v103
    %v105 = vpop.f32.mrb[0].mxu0
    %106 = vdwg.mxu0
    %v107 = vmul.f32 %v104, %v104
    %vm108 = vcmask 286720
    %v109 = vsel %vm108, %v107, 0.0
    %110 = vadd.xlane.f32.xlu0 %v109
    %v111 = vpop.xlane.xlu0 %110
    %v112 = vrot.slane %v111, 4
    %v113 = vadd.f32 %v111, %v112
    %v114 = vrot.slane %v113, 2
    %v115 = vadd.f32 %v113, %v114
    %v116 = vrot.slane %v115, 1
    %v117 = vadd.f32 %v115, %v116
    %s118 = vtos %v117
    %v119 = vstv %s118
    %v120 = vrsqrt.pop %v119
    %v121 = vmul.f32 %v119, %v120
    %vm122 = vcmp.eq.f32.partialorder %v119, inf
    %v123 = vsel %vm122, %v119, %v121
    %vm124 = vcmp.eq.f32.partialorder %v119, 0.0
    %v125 = vand.u32 %v119, 2147483648
    %v126 = vsel %vm124, %v125, %v123
    %s127 = vtos %v126
    %s128 = sadd.f32 %s127, 1e-12
    %v129 = vstv %s128
    %v130 = vrcp.pop %v129
    %v131 = vmul.f32 %v104, %v130
    %vm132 = vcmask 293888
    %v134 = vsel %vm132, %v131, 0
    %v137 = vsel %vm132, %v31, 0
    %139 = vmatprep.subr.mxu0 0.0
    %140 = vmatpush1.xpose.msra.mxu0 %v137
    %141 = vmatprep.subr.mxu0 0.0
    %142 = vmatpush1.xpose.msra.mxu0 0.0
    %143 = vmatprep.subr.mxu0 0.0
    %144 = vmatpush1.xpose.msra.mxu0 0.0
    %145 = vmatprep.subr.mxu0 0.0
    %146 = vmatpush1.xpose.msra.mxu0 0.0
    %147 = vmatprep.subr.mxu0 0.0
    %148 = vmatpush1.xpose.msra.mxu0 0.0
    %149 = vmatprep.subr.mxu0 0.0
    %150 = vmatpush1.xpose.msra.mxu0 0.0
    %151 = vmatprep.subr.mxu0 0.0
    %152 = vmatpush1.xpose.msra.mxu0 0.0
    %153 = vmatprep.subr.mxu0 0.0
    %154 = vmatpush1.xpose.msra.mxu0 0.0
    %155 = vmatprep.subr.mxu0 0.0
    %156 = vmatpush1.xpose.msra.mxu0 0.0
    %157 = vmatprep.subr.mxu0 0.0
    %158 = vmatpush1.xpose.msra.mxu0 0.0
    %159 = vmatprep.subr.mxu0 0.0
    %160 = vmatpush1.xpose.msra.mxu0 0.0
    %161 = vmatprep.subr.mxu0 0.0
    %162 = vmatpush1.xpose.msra.mxu0 0.0
    %163 = vmatprep.subr.mxu0 0.0
    %164 = vmatpush1.xpose.msra.mxu0 0.0
    %165 = vmatprep.subr.mxu0 0.0
    %166 = vmatpush1.xpose.msra.mxu0 0.0
    %167 = vmatprep.subr.mxu0 0.0
    %168 = vmatpush1.xpose.msra.mxu0 0.0
    %169 = vmatprep.subr.mxu0 0.0
    %170 = vmatpush1.xpose.msra.mxu0 0.0
    %171 = vmatprep.subr.mxu0 0.0
    %172 = vmatpush1.xpose.msra.mxu0 0.0
    %173 = vmatprep.subr.mxu0 0.0
    %174 = vmatpush1.xpose.msra.mxu0 0.0
    %175 = vmatprep.subr.mxu0 0.0
    %176 = vmatpush1.xpose.msra.mxu0 0.0
    %177 = vmatprep.subr.mxu0 0.0
    %178 = vmatpush1.xpose.msra.mxu0 0.0
    %179 = vmatprep.subr.mxu0 0.0
    %180 = vmatpush1.xpose.msra.mxu0 0.0
    %181 = vmatprep.subr.mxu0 0.0
    %182 = vmatpush1.xpose.msra.mxu0 0.0
    %183 = vmatprep.subr.mxu0 0.0
    %184 = vmatpush1.xpose.msra.mxu0 0.0
    %185 = vmatprep.subr.mxu0 0.0
    %186 = vmatpush1.xpose.msra.mxu0 0.0
    %187 = vmatprep.subr.mxu0 0.0
    %188 = vmatpush1.xpose.msra.mxu0 0.0
    %189 = vmatprep.subr.mxu0 0.0
    %190 = vmatpush1.xpose.msra.mxu0 0.0
    %191 = vmatprep.subr.mxu0 0.0
    %192 = vmatpush1.xpose.msra.mxu0 0.0
    %193 = vmatprep.subr.mxu0 0.0
    %194 = vmatpush1.xpose.msra.mxu0 0.0
    %195 = vmatprep.subr.mxu0 0.0
    %196 = vmatpush1.xpose.msra.mxu0 0.0
    %197 = vmatprep.subr.mxu0 0.0
    %198 = vmatpush1.xpose.msra.mxu0 0.0
    %199 = vmatprep.subr.mxu0 0.0
    %200 = vmatpush1.xpose.msra.mxu0 0.0
    %201 = vmatprep.subr.mxu0 0.0
    %202 = vmatpush1.xpose.msra.mxu0 0.0
    %203 = vmatprep.mubr.f32.mxu0 0.0
    %204 = vmatmul.mubr.f32.gmra.mrb[0].mxu0 %v134
    %v205 = vpop.f32.mrb[0].mxu0
    %v206 = vadd.f32 0.0, %v205
    %v207 = vpop.f32.mrb[0].mxu0
    %208 = vdwg.mxu0
    %v209 = vmul.f32 %v206, %v206
    %vm210 = vcmask 57344
    %v211 = vsel %vm210, %v209, 0.0
    %212 = vadd.xlane.f32.xlu0 %v211
    %v213 = vpop.xlane.xlu0 %212
    %v214 = vrot.slane %v213, 4
    %v215 = vadd.f32 %v213, %v214
    %v216 = vrot.slane %v215, 2
    %v217 = vadd.f32 %v215, %v216
    %v218 = vrot.slane %v217, 1
    %v219 = vadd.f32 %v217, %v218
    %s220 = vtos %v219
    %v221 = vstv %s220
    %v222 = vrsqrt.pop %v221
    %v223 = vmul.f32 %v221, %v222
    %vm224 = vcmp.eq.f32.partialorder %v221, inf
    %v225 = vsel %vm224, %v221, %v223
    %vm226 = vcmp.eq.f32.partialorder %v221, 0.0
    %v227 = vand.u32 %v221, 2147483648
    %v228 = vsel %vm226, %v227, %v225
    %s229 = vtos %v228
    %s230 = sadd.f32 %s229, 1e-12
    %v231 = vstv %s230
    %v232 = vrcp.pop %v231
    %v233 = vmul.f32 %v206, %v232
    %v235 = vsel %vm33, %v233, 0
    %237 = vmatprep.subr.mxu0 0.0
    %238 = vmatpush1.msra.mxu0 %v31
    %239 = vmatprep.subr.mxu0 0.0
    %240 = vmatpush1.msra.mxu0 0.0
    %241 = vmatprep.subr.mxu0 0.0
    %242 = vmatpush1.msra.mxu0 0.0
    %243 = vmatprep.subr.mxu0 0.0
    %244 = vmatpush1.msra.mxu0 0.0
    %245 = vmatprep.subr.mxu0 0.0
    %246 = vmatpush1.msra.mxu0 0.0
    %247 = vmatprep.subr.mxu0 0.0
    %248 = vmatpush1.msra.mxu0 0.0
    %249 = vmatprep.subr.mxu0 0.0
    %250 = vmatpush1.msra.mxu0 0.0
    %251 = vmatprep.subr.mxu0 0.0
    %252 = vmatpush1.msra.mxu0 0.0
    %253 = vmatprep.subr.mxu0 0.0
    %254 = vmatpush1.msra.mxu0 0.0
    %255 = vmatprep.subr.mxu0 0.0
    %256 = vmatpush1.msra.mxu0 0.0
    %257 = vmatprep.subr.mxu0 0.0
    %258 = vmatpush1.msra.mxu0 0.0
    %259 = vmatprep.subr.mxu0 0.0
    %260 = vmatpush1.msra.mxu0 0.0
    %261 = vmatprep.subr.mxu0 0.0
    %262 = vmatpush1.msra.mxu0 0.0
    %263 = vmatprep.subr.mxu0 0.0
    %264 = vmatpush1.msra.mxu0 0.0
    %265 = vmatprep.subr.mxu0 0.0
    %266 = vmatpush1.msra.mxu0 0.0
    %267 = vmatprep.subr.mxu0 0.0
    %268 = vmatpush1.msra.mxu0 0.0
    %269 = vmatprep.subr.mxu0 0.0
    %270 = vmatpush1.msra.mxu0 0.0
    %271 = vmatprep.subr.mxu0 0.0
    %272 = vmatpush1.msra.mxu0 0.0
    %273 = vmatprep.subr.mxu0 0.0
    %274 = vmatpush1.msra.mxu0 0.0
    %275 = vmatprep.subr.mxu0 0.0
    %276 = vmatpush1.msra.mxu0 0.0
    %277 = vmatprep.subr.mxu0 0.0
    %278 = vmatpush1.msra.mxu0 0.0
    %279 = vmatprep.subr.mxu0 0.0
    %280 = vmatpush1.msra.mxu0 0.0
    %281 = vmatprep.subr.mxu0 0.0
    %282 = vmatpush1.msra.mxu0 0.0
    %283 = vmatprep.subr.mxu0 0.0
    %284 = vmatpush1.msra.mxu0 0.0
    %285 = vmatprep.subr.mxu0 0.0
    %286 = vmatpush1.msra.mxu0 0.0
    %287 = vmatprep.subr.mxu0 0.0
    %288 = vmatpush1.msra.mxu0 0.0
    %289 = vmatprep.subr.mxu0 0.0
    %290 = vmatpush1.msra.mxu0 0.0
    %291 = vmatprep.subr.mxu0 0.0
    %292 = vmatpush1.msra.mxu0 0.0
    %293 = vmatprep.subr.mxu0 0.0
    %294 = vmatpush1.msra.mxu0 0.0
    %295 = vmatprep.subr.mxu0 0.0
    %296 = vmatpush1.msra.mxu0 0.0
    %297 = vmatprep.subr.mxu0 0.0
    %298 = vmatpush1.msra.mxu0 0.0
    %299 = vmatprep.subr.mxu0 0.0
    %300 = vmatpush1.msra.mxu0 0.0
    %301 = vmatprep.mubr.f32.mxu0 0.0
    %302 = vmatmul.mubr.f32.gmra.mrb[0].mxu0 %v235
    %v303 = vpop.f32.mrb[0].mxu0
    %v304 = vadd.f32 0.0, %v303
    %v305 = vpop.f32.mrb[0].mxu0
    %306 = vdwg.mxu0
    %v307 = vmul.f32 %v304, %v131
    %v308 = vsel %vm108, %v307, 0.0
    %309 = vadd.xlane.f32.xlu0 %v308
    %v310 = vpop.xlane.xlu0 %309
    %v311 = vrot.slane %v310, 4
    %v312 = vadd.f32 %v310, %v311
    %v313 = vrot.slane %v312, 2
    %v314 = vadd.f32 %v312, %v313
    %v315 = vrot.slane %v314, 1
    %v316 = vadd.f32 %v314, %v315
    %s317 = vtos %v316
    %v318 = vstv %s317
    %v319 = vrcp.pop %v318
    %v320 = vmul.f32 1.0, %v319
    %vm321 = vcmask 0
    %322 = vst.msk [vmem:[#allocation5] sm:$0x1] %vm321, %v320
    %323 = vst.msk [vmem:[#allocation6] sm:$0x1] %vm210, %v233
    %324 = vst.msk [vmem:[#allocation8] sm:$0x1] %vm108, %v131
    // Predicated region
    $region18: #{tpu_custom_call.1} parent=1 // pred_check
      _
    $region19: #{tpu_custom_call.1} parent=1 // pred_check_branch
      %326 = sbr.rel (0) target = $region21
    $region20: #{tpu_custom_call.1} parent=1 // pred_region
      %s328 = ssub.s32 16, 16
      %329 = vsyncadd [#allocation4], %s328
      %s331 = sshll.u32 [#allocation5], 4
      %s332 = int_to_ptr.vmem [resolvable:$true] %s331
      %334 = dma.vmem_to_hbm [thread:$0]  %s332, 16, %s3, [#allocation4]
    $region21: #{tpu_custom_call.1} parent=1 // pred_fallthru
      _
    // Predicated region
    $region22: #{tpu_custom_call.1} parent=1 // pred_check
      _
    $region23: #{tpu_custom_call.1} parent=1 // pred_check_branch
      %336 = sbr.rel (0) target = $region25
    $region24: #{tpu_custom_call.1} parent=1 // pred_region
      %s338 = ssub.s32 16, 16
      %339 = vsyncadd [#allocation7], %s338
      %s341 = sshll.u32 [#allocation6], 4
      %s342 = int_to_ptr.vmem [resolvable:$true] %s341
      %344 = dma.vmem_to_hbm [thread:$0]  %s342, 16, %s4, [#allocation7]
    $region25: #{tpu_custom_call.1} parent=1 // pred_fallthru
      _
    // Predicated region
    $region26: #{tpu_custom_call.1} parent=1 // pred_check
      _
    $region27: #{tpu_custom_call.1} parent=1 // pred_check_branch
      %346 = sbr.rel (0) target = $region29
    $region28: #{tpu_custom_call.1} parent=1 // pred_region
      %s348 = ssub.s32 16, 16
      %349 = vsyncadd [#allocation7], %s348
      %s351 = sshll.u32 [#allocation8], 4
      %s352 = int_to_ptr.vmem [resolvable:$true] %s351
      %354 = dma.vmem_to_hbm [thread:$0]  %s352, 16, %s5, [#allocation7]
    $region29: #{tpu_custom_call.1} parent=1 // pred_fallthru
      _
    // Predicated region
    $region30: #{tpu_custom_call.1} parent=1 // pred_check
      _
    $region31: #{tpu_custom_call.1} parent=1 // pred_check_branch
      %356 = sbr.rel (0) target = $region33
    $region32: #{tpu_custom_call.1} parent=1 // pred_region
      %357 = dma.done [#allocation4], 16
    $region33: #{tpu_custom_call.1} parent=1 // pred_fallthru
      _
    // Predicated region
    $region34: #{tpu_custom_call.1} parent=1 // pred_check
      _
    $region35: #{tpu_custom_call.1} parent=1 // pred_check_branch
      %359 = sbr.rel (0) target = $region37
    $region36: #{tpu_custom_call.1} parent=1 // pred_region
      %360 = dma.done [#allocation7], 16
    $region37: #{tpu_custom_call.1} parent=1 // pred_fallthru
      _
    // Predicated region
    $region38: #{tpu_custom_call.1} parent=1 // pred_check
      _
    $region39: #{tpu_custom_call.1} parent=1 // pred_check_branch
      %362 = sbr.rel (0) target = $region41
    $region40: #{tpu_custom_call.1} parent=1 // pred_region
      %363 = dma.done [#allocation7], 16
    $region41: #{tpu_custom_call.1} parent=1 // pred_fallthru
      _
    %364 = vsyncpa [#allocation3], 1
    %365 = vsyncpa [#allocation4], 1
    %366 = vsyncpa [#allocation7], 1

</llo_original>
